<compile_context>
chip_gen: v5e
topology: v5e:2x2
jax: 0.10.0
libtpu: 0.0.40
codegen_flags: <defaults>
</compile_context>

<pallas_src>
import jax
import jax.numpy as jnp
from jax.experimental import pallas as pl
from jax.experimental.pallas import tpu as pltpu

EPS = 1e-5
NEG_SLOPE = 0.1


def _bn_lrelu(h, proj, gamma_t, beta_t, relu=True):
    """Fused single-pass BatchNorm (+ optional LeakyReLU), all stats in f32.

    h:        (R, W*C) f32 activations (R = N*H).
    proj:     (W*C, W*C) channel-averaging projection (averages per-(w,c)
              column stats over W and re-broadcasts per-channel values back to
              the tiled lane layout).
    gamma_t, beta_t: (1, W*C) f32 affine params, pre-tiled over W.
    """
    R = h.shape[0]
    # Column means via MXU (M=1 pushes; MXU slot has slack here).
    ones_mean = jnp.full((1, R), 1.0 / R, dtype=jnp.float32)
    colmean = jnp.dot(ones_mean, h, preferred_element_type=jnp.float32)
    colmsq = jnp.dot(ones_mean, h * h, preferred_element_type=jnp.float32)
    mean_t = jnp.dot(colmean, proj, preferred_element_type=jnp.float32)
    msq_t = jnp.dot(colmsq, proj, preferred_element_type=jnp.float32)
    # TODO(synk): E[x^2] - mean^2 cancels badly when |mean| >> std; switch to
    #             a centered two-pass if activations carry large offsets.
    var_t = msq_t - mean_t * mean_t                      # biased batch variance
    scale_t = gamma_t * jax.lax.rsqrt(var_t + EPS)
    bias_t = beta_t - mean_t * scale_t
    hn = h * scale_t + bias_t                            # one FMA / element
    if relu:
        hn = jnp.where(hn > 0, hn, NEG_SLOPE * hn)
    return hn


def bottleneck_kernel(x_ref, mtop_ref, mbot_ref, w1_ref, band_ref, w3_ref,
                      p1_ref, p3_ref, g1_ref, b1_ref, g2_ref, b2_ref,
                      g3_ref, b3_ref, out_ref):
    R = x_ref.shape[0]                      # R = N*H
    mm_dt = w1_ref.dtype                    # matmul operand dtype (bf16 / f32)

    x = x_ref[...]                          # (R, W*Cin) f32, lane-dense identity
    p1 = p1_ref[...]

    # --- conv1x1 -> bn1 -> leaky relu (block-diagonal weight, one matmul) ----
    h1 = jnp.dot(x.astype(mm_dt), w1_ref[...],
                 preferred_element_type=jnp.float32)
    h1 = _bn_lrelu(h1, p1, g1_ref[...], b1_ref[...])

    # --- conv3x3 (stride 1, pad 1) ------------------------------------------
    # W padding / kx taps are folded into the banded weight matrices.  H
    # padding needs no scratch round-trip: the ky=0 / ky=2 taps are sublane
    # rolls of the h1 slab with the cross-image (and wrap-around) rows zeroed
    # by precomputed boundary masks.
    up = pltpu.roll(h1, shift=1, axis=0) * mtop_ref[...]        # row above
    dn = pltpu.roll(h1, shift=R - 1, axis=0) * mbot_ref[...]    # row below
    acc = jnp.dot(up.astype(mm_dt), band_ref[0],
                  preferred_element_type=jnp.float32)
    acc = acc + jnp.dot(h1.astype(mm_dt), band_ref[1],
                        preferred_element_type=jnp.float32)
    acc = acc + jnp.dot(dn.astype(mm_dt), band_ref[2],
                        preferred_element_type=jnp.float32)
    h2 = _bn_lrelu(acc, p1, g2_ref[...], b2_ref[...])

    # --- conv1x1 expansion -> bn3 -------------------------------------------
    h3 = jnp.dot(h2.astype(mm_dt), w3_ref[...],
                 preferred_element_type=jnp.float32)
    h3 = _bn_lrelu(h3, p3_ref[...], g3_ref[...], b3_ref[...], relu=False)

    # --- residual add (exact f32 identity) + final leaky relu ----------------
    out = h3 + x
    out_ref[...] = jnp.where(out > 0, out, NEG_SLOPE * out)


def prep_params(params, W, matmul_dtype=jnp.bfloat16):
    """Weight-only layout transforms.  Call ONCE per parameter set (outside the
    per-step jit); the result is passed to the forward functions.

    matmul_dtype: dtype of the MXU operands (bf16 for production, f32 for
    bit-parity tests).  BN projection / affine params always stay f32.
    """
    w1, g1, b1, w2, g2, b2, w3, g3, b3 = params
    Cin, C1 = w1.shape
    Cout = w3.shape[1]
    f32 = jnp.float32
    mdt = matmul_dtype

    eye_w = jnp.eye(W, dtype=f32)
    # Block-diagonal 1x1-conv weights acting on the (.., W*C) lane layout.
    w1_big = jnp.kron(eye_w, w1.astype(f32)).astype(mdt)      # (W*Cin, W*C1)
    w3_big = jnp.kron(eye_w, w3.astype(f32)).astype(mdt)      # (W*C1, W*Cout)

    # Banded 3x3-conv weights: band[ky][w'*C1+ci, w*C1+co] = w2[ky, w'-w+1, ci, co]
    # (zero outside |w'-w|<=1, implementing the W zero-padding for free).
    bands = jnp.stack([
        sum(jnp.kron(jnp.eye(W, k=1 - kx, dtype=f32), w2[ky, kx].astype(f32))
            for kx in range(3))
        for ky in range(3)], axis=0).astype(mdt)              # (3, W*C1, W*C1)

    # Channel-stat projection: averages per-(w,c) column stats over W and
    # re-broadcasts the per-channel value to every w slot.  Kept f32.
    p1 = jnp.kron(jnp.ones((W, W), f32) / W, jnp.eye(C1, dtype=f32))
    p3 = jnp.kron(jnp.ones((W, W), f32) / W, jnp.eye(Cout, dtype=f32))

    def tile_c(v, c):
        return jnp.tile(v.reshape(1, c).astype(f32), (1, W))  # (1, W*c)

    return (w1_big, bands, w3_big, p1, p3,
            tile_c(g1, C1), tile_c(b1, C1),
            tile_c(g2, C1), tile_c(b2, C1),
            tile_c(g3, Cout), tile_c(b3, Cout))


def bottleneck_forward_nhwc(x_nhwc, prepped):
    """Hot-path entry. x_nhwc: (N, H, W, Cin) f32 -> (N, H, W, Cout) f32."""
    N, H, W, Cin = x_nhwc.shape
    assert prepped[0].shape[0] == W * Cin, "prepped weights built for other W/Cin"
    Cout = prepped[2].shape[1] // W
    assert Cin == Cout, "identity add requires in_planes == 4 * out_planes"
    C1 = prepped[0].shape[1] // W
    R = N * H

    # Per-image boundary-row masks for the rolled conv3x3 taps.  Pure shape
    # constants: evaluated once at trace time and baked into the program.
    rows = jnp.arange(R) % H
    mtop = (rows != 0).astype(jnp.float32).reshape(R, 1)       # ky=0 tap valid
    mbot = (rows != H - 1).astype(jnp.float32).reshape(R, 1)   # ky=2 tap valid

    x2 = x_nhwc.reshape(R, W * Cin).astype(jnp.float32)        # lane-dense slab

    vmem = pl.BlockSpec(memory_space=pltpu.MemorySpace.VMEM)
    out2 = pl.pallas_call(
        bottleneck_kernel,
        out_shape=jax.ShapeDtypeStruct((R, W * Cout), jnp.float32),
        in_specs=[vmem] * 14,
        out_specs=vmem,
        compiler_params=pltpu.CompilerParams(
            vmem_limit_bytes=32 * 1024 * 1024),
    )(x2, mtop, mbot, *prepped)
    del C1
    return out2.reshape(N, H, W, Cout)


def bottleneck_forward(x_nchw, prepped):
    """PyTorch-parity wrapper: (N, Cin, H, W) -> (N, Cout, H, W).
    Transposes live here only; the NHWC entry is the hot path."""
    x_nhwc = jnp.transpose(x_nchw, (0, 2, 3, 1))
    out = bottleneck_forward_nhwc(x_nhwc, prepped)
    return jnp.transpose(out, (0, 3, 1, 2))


def bottleneck_reference(x_nchw, params):
    """Pure-JAX reference (same math, host-side lowering) for validation."""
    (w1, g1, b1, w2, g2, b2, w3, g3, b3) = params
    x = jnp.transpose(x_nchw, (0, 2, 3, 1)).astype(jnp.float32)
    N, H, W, _ = x.shape

    def bn(h, g, b):
        mean = h.mean(axis=(0, 1, 2), keepdims=True)
        var = ((h - mean) ** 2).mean(axis=(0, 1, 2), keepdims=True)
        return (h - mean) / jnp.sqrt(var + EPS) * g.reshape(1, 1, 1, -1) \
            + b.reshape(1, 1, 1, -1)

    def lrelu(h):
        return jnp.where(h > 0, h, NEG_SLOPE * h)

    h = jnp.einsum('nhwc,cd->nhwd', x, w1)
    h = lrelu(bn(h, g1, b1))

    hp = jnp.pad(h, ((0, 0), (1, 1), (1, 1), (0, 0)))
    h2 = jnp.zeros((N, H, W, w2.shape[-1]), jnp.float32)
    for dy in range(3):
        for dx in range(3):
            h2 = h2 + jnp.einsum('nhwc,cd->nhwd',
                                 hp[:, dy:dy + H, dx:dx + W, :], w2[dy, dx])
    h2 = lrelu(bn(h2, g2, b2))

    h3 = jnp.einsum('nhwc,cd->nhwd', h2, w3)
    h3 = bn(h3, g3, b3)

    out = lrelu(h3 + x)
    return jnp.transpose(out, (0, 3, 1, 2))


def make_params(key, in_planes, out_planes):
    """Deterministic synthetic parameters.

    Layouts (vs. PyTorch conv weights (Cout, Cin, kH, kW)):
      w1: (Cin, C1)          == torch_w1[:, :, 0, 0].T
      w2: (3, 3, C1, C1)     == torch_w2.transpose(2, 3, 1, 0)  (ky, kx, ci, co)
      w3: (C1, 4*C1)         == torch_w3[:, :, 0, 0].T
    """
    expansion = 4
    c1 = out_planes
    cout = out_planes * expansion
    ks = jax.random.split(key, 9)
    w1 = jax.random.normal(ks[0], (in_planes, c1), jnp.float32) * 0.1
    g1 = 1.0 + 0.1 * jax.random.normal(ks[1], (1, c1), jnp.float32)
    b1 = 0.1 * jax.random.normal(ks[2], (1, c1), jnp.float32)
    w2 = jax.random.normal(ks[3], (3, 3, c1, c1), jnp.float32) * 0.1
    g2 = 1.0 + 0.1 * jax.random.normal(ks[4], (1, c1), jnp.float32)
    b2 = 0.1 * jax.random.normal(ks[5], (1, c1), jnp.float32)
    w3 = jax.random.normal(ks[6], (c1, cout), jnp.float32) * 0.1
    g3 = 1.0 + 0.1 * jax.random.normal(ks[7], (1, cout), jnp.float32)
    b3 = 0.1 * jax.random.normal(ks[8], (1, cout), jnp.float32)
    return (w1, g1, b1, w2, g2, b2, w3, g3, b3)


if __name__ == "__main__":
    key = jax.random.PRNGKey(0)
    k_x, k_p = jax.random.split(key)

    # Bottleneck(in_planes=16, out_planes=4, stride=1, downsample=None)
    # -> identity add requires in_planes == out_planes * 4.
    N, Cin, H, W = 2, 16, 16, 16
    out_planes = 4

    x = jax.random.normal(k_x, (N, Cin, H, W), jnp.float32)
    params = make_params(k_p, Cin, out_planes)
    ref = bottleneck_reference(x, params)

    fwd = jax.jit(bottleneck_forward)

    # --- f32 MXU operands: bit-parity check against the f32 reference --------
    prepped_f32 = prep_params(params, W, matmul_dtype=jnp.float32)
    out_f32 = jax.block_until_ready(fwd(x, prepped_f32))
    assert out_f32.shape == (N, out_planes * 4, H, W)
    diff_f32 = float(jnp.max(jnp.abs(out_f32 - ref)))
    assert jnp.allclose(out_f32, ref, atol=1e-4, rtol=1e-4), \
        f"f32 path: max abs diff {diff_f32}"

    # --- bf16 MXU operands (production default): stats stay f32, so only the
    # matmul-operand rounding (~0.4% relative per stage) separates it from the
    # f32 reference -> check at a correspondingly looser tolerance. ----------
    prepped_bf16 = prep_params(params, W, matmul_dtype=jnp.bfloat16)
    out_bf16 = jax.block_until_ready(fwd(x, prepped_bf16))
    diff_bf16 = float(jnp.max(jnp.abs(out_bf16 - ref)))
    assert jnp.allclose(out_bf16, ref, atol=3e-2, rtol=3e-2), \
        f"bf16 path: max abs diff {diff_bf16}"

    print("KERNEL_OK")
</pallas_src>

<mosaic_0001>
module attributes {stable_mosaic.version = 11 : i64} {
  func.func @bottleneck_kernel(%arg0: memref<32x256xf32, #tpu.memory_space<vmem>>, %arg1: memref<32x1xf32, #tpu.memory_space<vmem>>, %arg2: memref<32x1xf32, #tpu.memory_space<vmem>>, %arg3: memref<256x64xf32, #tpu.memory_space<vmem>>, %arg4: memref<3x64x64xf32, #tpu.memory_space<vmem>>, %arg5: memref<64x256xf32, #tpu.memory_space<vmem>>, %arg6: memref<64x64xf32, #tpu.memory_space<vmem>>, %arg7: memref<256x256xf32, #tpu.memory_space<vmem>>, %arg8: memref<1x64xf32, #tpu.memory_space<vmem>>, %arg9: memref<1x64xf32, #tpu.memory_space<vmem>>, %arg10: memref<1x64xf32, #tpu.memory_space<vmem>>, %arg11: memref<1x64xf32, #tpu.memory_space<vmem>>, %arg12: memref<1x256xf32, #tpu.memory_space<vmem>>, %arg13: memref<1x256xf32, #tpu.memory_space<vmem>>, %arg14: memref<32x256xf32, #tpu.memory_space<vmem>>) attributes {dimension_semantics = [], scalar_prefetch = 0 : i64, scratch_operands = 0 : i64, tpu.core_type = #tpu.core_type<tc>} {
    %c0 = arith.constant 0 : index
    %c0_0 = arith.constant 0 : index
    %0 = vector.load %arg0[%c0, %c0_0] : memref<32x256xf32, #tpu.memory_space<vmem>>, vector<32x256xf32>
    %c0_1 = arith.constant 0 : index
    %c0_2 = arith.constant 0 : index
    %1 = vector.load %arg6[%c0_1, %c0_2] : memref<64x64xf32, #tpu.memory_space<vmem>>, vector<64x64xf32>
    %c0_3 = arith.constant 0 : index
    %c0_4 = arith.constant 0 : index
    %2 = vector.load %arg3[%c0_3, %c0_4] : memref<256x64xf32, #tpu.memory_space<vmem>>, vector<256x64xf32>
    %cst = arith.constant dense<0.000000e+00> : vector<32x64xf32>
    %3 = tpu.matmul %0, %2, %cst {dimension_numbers = #tpu.dot_dimension_numbers<[1], [0], [0], [1], [0, 0, 1, 1], [], []>} : vector<32x256xf32>, vector<256x64xf32>, vector<32x64xf32> -> vector<32x64xf32>
    %c0_5 = arith.constant 0 : index
    %c0_6 = arith.constant 0 : index
    %4 = vector.load %arg8[%c0_5, %c0_6] : memref<1x64xf32, #tpu.memory_space<vmem>>, vector<1x64xf32>
    %c0_7 = arith.constant 0 : index
    %c0_8 = arith.constant 0 : index
    %5 = vector.load %arg9[%c0_7, %c0_8] : memref<1x64xf32, #tpu.memory_space<vmem>>, vector<1x64xf32>
    %cst_9 = arith.constant 3.125000e-02 : f32
    %6 = vector.broadcast %cst_9 : f32 to vector<1x32xf32>
    %cst_10 = arith.constant dense<0.000000e+00> : vector<1x64xf32>
    %7 = tpu.matmul %6, %3, %cst_10 {dimension_numbers = #tpu.dot_dimension_numbers<[1], [0], [0], [1], [0, 0, 1, 1], [], []>} : vector<1x32xf32>, vector<32x64xf32>, vector<1x64xf32> -> vector<1x64xf32>
    %8 = arith.mulf %3, %3 : vector<32x64xf32>
    %cst_11 = arith.constant dense<0.000000e+00> : vector<1x64xf32>
    %9 = tpu.matmul %6, %8, %cst_11 {dimension_numbers = #tpu.dot_dimension_numbers<[1], [0], [0], [1], [0, 0, 1, 1], [], []>} : vector<1x32xf32>, vector<32x64xf32>, vector<1x64xf32> -> vector<1x64xf32>
    %cst_12 = arith.constant dense<0.000000e+00> : vector<1x64xf32>
    %10 = tpu.matmul %7, %1, %cst_12 {dimension_numbers = #tpu.dot_dimension_numbers<[1], [0], [0], [1], [0, 0, 1, 1], [], []>} : vector<1x64xf32>, vector<64x64xf32>, vector<1x64xf32> -> vector<1x64xf32>
    %cst_13 = arith.constant dense<0.000000e+00> : vector<1x64xf32>
    %11 = tpu.matmul %9, %1, %cst_13 {dimension_numbers = #tpu.dot_dimension_numbers<[1], [0], [0], [1], [0, 0, 1, 1], [], []>} : vector<1x64xf32>, vector<64x64xf32>, vector<1x64xf32> -> vector<1x64xf32>
    %12 = arith.mulf %10, %10 : vector<1x64xf32>
    %13 = arith.subf %11, %12 : vector<1x64xf32>
    %cst_14 = arith.constant 9.99999974E-6 : f32
    %14 = vector.broadcast %cst_14 : f32 to vector<1x64xf32>
    %15 = arith.addf %13, %14 : vector<1x64xf32>
    %16 = math.rsqrt %15 : vector<1x64xf32>
    %17 = arith.mulf %4, %16 : vector<1x64xf32>
    %18 = arith.mulf %10, %17 : vector<1x64xf32>
    %19 = arith.subf %5, %18 : vector<1x64xf32>
    %20 = vector.broadcast %17 : vector<1x64xf32> to vector<32x64xf32>
    %21 = arith.mulf %3, %20 : vector<32x64xf32>
    %22 = vector.broadcast %19 : vector<1x64xf32> to vector<32x64xf32>
    %23 = arith.addf %21, %22 : vector<32x64xf32>
    %cst_15 = arith.constant 0.000000e+00 : f32
    %24 = vector.broadcast %cst_15 : f32 to vector<32x64xf32>
    %25 = arith.cmpf ogt, %23, %24 : vector<32x64xf32>
    %cst_16 = arith.constant 1.000000e-01 : f32
    %26 = vector.broadcast %cst_16 : f32 to vector<32x64xf32>
    %27 = arith.mulf %26, %23 : vector<32x64xf32>
    %28 = arith.select %25, %23, %27 : vector<32x64xi1>, vector<32x64xf32>
    %c1_i32 = arith.constant 1 : i32
    %29 = tpu.dynamic_rotate %28 by %c1_i32 dim 0 : vector<32x64xf32>, i32 -> vector<32x64xf32>
    %c0_17 = arith.constant 0 : index
    %c0_18 = arith.constant 0 : index
    %30 = vector.load %arg1[%c0_17, %c0_18] : memref<32x1xf32, #tpu.memory_space<vmem>>, vector<32x1xf32>
    %31 = vector.broadcast %30 : vector<32x1xf32> to vector<32x64xf32>
    %32 = arith.mulf %29, %31 : vector<32x64xf32>
    %c31_i32 = arith.constant 31 : i32
    %33 = tpu.dynamic_rotate %28 by %c31_i32 dim 0 : vector<32x64xf32>, i32 -> vector<32x64xf32>
    %c0_19 = arith.constant 0 : index
    %c0_20 = arith.constant 0 : index
    %34 = vector.load %arg2[%c0_19, %c0_20] : memref<32x1xf32, #tpu.memory_space<vmem>>, vector<32x1xf32>
    %35 = vector.broadcast %34 : vector<32x1xf32> to vector<32x64xf32>
    %36 = arith.mulf %33, %35 : vector<32x64xf32>
    %c0_21 = arith.constant 0 : index
    %c0_22 = arith.constant 0 : index
    %c0_23 = arith.constant 0 : index
    %37 = vector.load %arg4[%c0_21, %c0_22, %c0_23] : memref<3x64x64xf32, #tpu.memory_space<vmem>>, vector<1x64x64xf32>
    %38 = vector.shape_cast %37 : vector<1x64x64xf32> to vector<64x64xf32>
    %cst_24 = arith.constant dense<0.000000e+00> : vector<32x64xf32>
    %39 = tpu.matmul %32, %38, %cst_24 {dimension_numbers = #tpu.dot_dimension_numbers<[1], [0], [0], [1], [0, 0, 1, 1], [], []>} : vector<32x64xf32>, vector<64x64xf32>, vector<32x64xf32> -> vector<32x64xf32>
    %c1 = arith.constant 1 : index
    %c0_25 = arith.constant 0 : index
    %c0_26 = arith.constant 0 : index
    %40 = vector.load %arg4[%c1, %c0_25, %c0_26] : memref<3x64x64xf32, #tpu.memory_space<vmem>>, vector<1x64x64xf32>
    %41 = vector.shape_cast %40 : vector<1x64x64xf32> to vector<64x64xf32>
    %cst_27 = arith.constant dense<0.000000e+00> : vector<32x64xf32>
    %42 = tpu.matmul %28, %41, %cst_27 {dimension_numbers = #tpu.dot_dimension_numbers<[1], [0], [0], [1], [0, 0, 1, 1], [], []>} : vector<32x64xf32>, vector<64x64xf32>, vector<32x64xf32> -> vector<32x64xf32>
    %43 = arith.addf %39, %42 : vector<32x64xf32>
    %c2 = arith.constant 2 : index
    %c0_28 = arith.constant 0 : index
    %c0_29 = arith.constant 0 : index
    %44 = vector.load %arg4[%c2, %c0_28, %c0_29] : memref<3x64x64xf32, #tpu.memory_space<vmem>>, vector<1x64x64xf32>
    %45 = vector.shape_cast %44 : vector<1x64x64xf32> to vector<64x64xf32>
    %cst_30 = arith.constant dense<0.000000e+00> : vector<32x64xf32>
    %46 = tpu.matmul %36, %45, %cst_30 {dimension_numbers = #tpu.dot_dimension_numbers<[1], [0], [0], [1], [0, 0, 1, 1], [], []>} : vector<32x64xf32>, vector<64x64xf32>, vector<32x64xf32> -> vector<32x64xf32>
    %47 = arith.addf %43, %46 : vector<32x64xf32>
    %c0_31 = arith.constant 0 : index
    %c0_32 = arith.constant 0 : index
    %48 = vector.load %arg10[%c0_31, %c0_32] : memref<1x64xf32, #tpu.memory_space<vmem>>, vector<1x64xf32>
    %c0_33 = arith.constant 0 : index
    %c0_34 = arith.constant 0 : index
    %49 = vector.load %arg11[%c0_33, %c0_34] : memref<1x64xf32, #tpu.memory_space<vmem>>, vector<1x64xf32>
    %cst_35 = arith.constant 3.125000e-02 : f32
    %50 = vector.broadcast %cst_35 : f32 to vector<1x32xf32>
    %cst_36 = arith.constant dense<0.000000e+00> : vector<1x64xf32>
    %51 = tpu.matmul %50, %47, %cst_36 {dimension_numbers = #tpu.dot_dimension_numbers<[1], [0], [0], [1], [0, 0, 1, 1], [], []>} : vector<1x32xf32>, vector<32x64xf32>, vector<1x64xf32> -> vector<1x64xf32>
    %52 = arith.mulf %47, %47 : vector<32x64xf32>
    %cst_37 = arith.constant dense<0.000000e+00> : vector<1x64xf32>
    %53 = tpu.matmul %50, %52, %cst_37 {dimension_numbers = #tpu.dot_dimension_numbers<[1], [0], [0], [1], [0, 0, 1, 1], [], []>} : vector<1x32xf32>, vector<32x64xf32>, vector<1x64xf32> -> vector<1x64xf32>
    %cst_38 = arith.constant dense<0.000000e+00> : vector<1x64xf32>
    %54 = tpu.matmul %51, %1, %cst_38 {dimension_numbers = #tpu.dot_dimension_numbers<[1], [0], [0], [1], [0, 0, 1, 1], [], []>} : vector<1x64xf32>, vector<64x64xf32>, vector<1x64xf32> -> vector<1x64xf32>
    %cst_39 = arith.constant dense<0.000000e+00> : vector<1x64xf32>
    %55 = tpu.matmul %53, %1, %cst_39 {dimension_numbers = #tpu.dot_dimension_numbers<[1], [0], [0], [1], [0, 0, 1, 1], [], []>} : vector<1x64xf32>, vector<64x64xf32>, vector<1x64xf32> -> vector<1x64xf32>
    %56 = arith.mulf %54, %54 : vector<1x64xf32>
    %57 = arith.subf %55, %56 : vector<1x64xf32>
    %cst_40 = arith.constant 9.99999974E-6 : f32
    %58 = vector.broadcast %cst_40 : f32 to vector<1x64xf32>
    %59 = arith.addf %57, %58 : vector<1x64xf32>
    %60 = math.rsqrt %59 : vector<1x64xf32>
    %61 = arith.mulf %48, %60 : vector<1x64xf32>
    %62 = arith.mulf %54, %61 : vector<1x64xf32>
    %63 = arith.subf %49, %62 : vector<1x64xf32>
    %64 = vector.broadcast %61 : vector<1x64xf32> to vector<32x64xf32>
    %65 = arith.mulf %47, %64 : vector<32x64xf32>
    %66 = vector.broadcast %63 : vector<1x64xf32> to vector<32x64xf32>
    %67 = arith.addf %65, %66 : vector<32x64xf32>
    %cst_41 = arith.constant 0.000000e+00 : f32
    %68 = vector.broadcast %cst_41 : f32 to vector<32x64xf32>
    %69 = arith.cmpf ogt, %67, %68 : vector<32x64xf32>
    %cst_42 = arith.constant 1.000000e-01 : f32
    %70 = vector.broadcast %cst_42 : f32 to vector<32x64xf32>
    %71 = arith.mulf %70, %67 : vector<32x64xf32>
    %72 = arith.select %69, %67, %71 : vector<32x64xi1>, vector<32x64xf32>
    %c0_43 = arith.constant 0 : index
    %c0_44 = arith.constant 0 : index
    %73 = vector.load %arg5[%c0_43, %c0_44] : memref<64x256xf32, #tpu.memory_space<vmem>>, vector<64x256xf32>
    %cst_45 = arith.constant dense<0.000000e+00> : vector<32x256xf32>
    %74 = tpu.matmul %72, %73, %cst_45 {dimension_numbers = #tpu.dot_dimension_numbers<[1], [0], [0], [1], [0, 0, 1, 1], [], []>} : vector<32x64xf32>, vector<64x256xf32>, vector<32x256xf32> -> vector<32x256xf32>
    %c0_46 = arith.constant 0 : index
    %c0_47 = arith.constant 0 : index
    %75 = vector.load %arg7[%c0_46, %c0_47] : memref<256x256xf32, #tpu.memory_space<vmem>>, vector<256x256xf32>
    %c0_48 = arith.constant 0 : index
    %c0_49 = arith.constant 0 : index
    %76 = vector.load %arg12[%c0_48, %c0_49] : memref<1x256xf32, #tpu.memory_space<vmem>>, vector<1x256xf32>
    %c0_50 = arith.constant 0 : index
    %c0_51 = arith.constant 0 : index
    %77 = vector.load %arg13[%c0_50, %c0_51] : memref<1x256xf32, #tpu.memory_space<vmem>>, vector<1x256xf32>
    %cst_52 = arith.constant 3.125000e-02 : f32
    %78 = vector.broadcast %cst_52 : f32 to vector<1x32xf32>
    %cst_53 = arith.constant dense<0.000000e+00> : vector<1x256xf32>
    %79 = tpu.matmul %78, %74, %cst_53 {dimension_numbers = #tpu.dot_dimension_numbers<[1], [0], [0], [1], [0, 0, 1, 1], [], []>} : vector<1x32xf32>, vector<32x256xf32>, vector<1x256xf32> -> vector<1x256xf32>
    %80 = arith.mulf %74, %74 : vector<32x256xf32>
    %cst_54 = arith.constant dense<0.000000e+00> : vector<1x256xf32>
    %81 = tpu.matmul %78, %80, %cst_54 {dimension_numbers = #tpu.dot_dimension_numbers<[1], [0], [0], [1], [0, 0, 1, 1], [], []>} : vector<1x32xf32>, vector<32x256xf32>, vector<1x256xf32> -> vector<1x256xf32>
    %cst_55 = arith.constant dense<0.000000e+00> : vector<1x256xf32>
    %82 = tpu.matmul %79, %75, %cst_55 {dimension_numbers = #tpu.dot_dimension_numbers<[1], [0], [0], [1], [0, 0, 1, 1], [], []>} : vector<1x256xf32>, vector<256x256xf32>, vector<1x256xf32> -> vector<1x256xf32>
    %cst_56 = arith.constant dense<0.000000e+00> : vector<1x256xf32>
    %83 = tpu.matmul %81, %75, %cst_56 {dimension_numbers = #tpu.dot_dimension_numbers<[1], [0], [0], [1], [0, 0, 1, 1], [], []>} : vector<1x256xf32>, vector<256x256xf32>, vector<1x256xf32> -> vector<1x256xf32>
    %84 = arith.mulf %82, %82 : vector<1x256xf32>
    %85 = arith.subf %83, %84 : vector<1x256xf32>
    %cst_57 = arith.constant 9.99999974E-6 : f32
    %86 = vector.broadcast %cst_57 : f32 to vector<1x256xf32>
    %87 = arith.addf %85, %86 : vector<1x256xf32>
    %88 = math.rsqrt %87 : vector<1x256xf32>
    %89 = arith.mulf %76, %88 : vector<1x256xf32>
    %90 = arith.mulf %82, %89 : vector<1x256xf32>
    %91 = arith.subf %77, %90 : vector<1x256xf32>
    %92 = vector.broadcast %89 : vector<1x256xf32> to vector<32x256xf32>
    %93 = arith.mulf %74, %92 : vector<32x256xf32>
    %94 = vector.broadcast %91 : vector<1x256xf32> to vector<32x256xf32>
    %95 = arith.addf %93, %94 : vector<32x256xf32>
    %96 = arith.addf %95, %0 : vector<32x256xf32>
    %cst_58 = arith.constant 0.000000e+00 : f32
    %97 = vector.broadcast %cst_58 : f32 to vector<32x256xf32>
    %98 = arith.cmpf ogt, %96, %97 : vector<32x256xf32>
    %cst_59 = arith.constant 1.000000e-01 : f32
    %99 = vector.broadcast %cst_59 : f32 to vector<32x256xf32>
    %100 = arith.mulf %99, %96 : vector<32x256xf32>
    %101 = arith.select %98, %96, %100 : vector<32x256xi1>, vector<32x256xf32>
    %c0_60 = arith.constant 0 : index
    %c0_61 = arith.constant 0 : index
    %102 = vector.load %arg14[%c0_60, %c0_61] : memref<32x256xf32, #tpu.memory_space<vmem>>, vector<32x256xf32>
    tpu.vector_store %arg14[%c0_60, %c0_61], %101 {strides = array<i32>} : memref<32x256xf32, #tpu.memory_space<vmem>>, vector<32x256xf32>,
    return
  }
}

</mosaic_0001>

<llo_original>
// kernel: bottleneck_forward.1
$region0: #{bottleneck_forward.1}
  #allocation0 [shape = 'u32[]', space=smem, size = 0x4, offset = 0x4, fixed_abs, tag = 'smem constant byte address 0x4 - core index']
  #allocation1 [shape = 'u32[72,128]{1,0:T(1,128)}', space=vmem, size = 0x9000, scoped, tag = 'internal scratch']
  %s0 = inlined_call_operand.vmem [shape: f32[32,256], index: 0, kind: input, shape index: {}]
  %s1 = inlined_call_operand.vmem [shape: f32[32,1], index: 1, kind: input, shape index: {}]
  %s2 = inlined_call_operand.vmem [shape: f32[32,1], index: 2, kind: input, shape index: {}]
  %s3 = inlined_call_operand.vmem [shape: f32[256,64], index: 3, kind: input, shape index: {}]
  %s4 = inlined_call_operand.vmem [shape: f32[3,64,64], index: 4, kind: input, shape index: {}]
  %s5 = inlined_call_operand.vmem [shape: f32[64,256], index: 5, kind: input, shape index: {}]
  %s6 = inlined_call_operand.vmem [shape: f32[64,64], index: 6, kind: input, shape index: {}]
  %s7 = inlined_call_operand.vmem [shape: f32[256,256], index: 7, kind: input, shape index: {}]
  %s8 = inlined_call_operand.vmem [shape: f32[1,64], index: 8, kind: input, shape index: {}]
  %s9 = inlined_call_operand.vmem [shape: f32[1,64], index: 9, kind: input, shape index: {}]
  %s10 = inlined_call_operand.vmem [shape: f32[1,64], index: 10, kind: input, shape index: {}]
  %s11 = inlined_call_operand.vmem [shape: f32[1,64], index: 11, kind: input, shape index: {}]
  %s12 = inlined_call_operand.vmem [shape: f32[1,256], index: 12, kind: input, shape index: {}]
  %s13 = inlined_call_operand.vmem [shape: f32[1,256], index: 13, kind: input, shape index: {}]
  %s14 = inlined_call_operand.vmem [shape: f32[32,256], index: 14, kind: output, shape index: {}]
  %s15 = sld [smem:[#allocation0]]
  $region66: #{bottleneck_forward.1} parent=0
    _
  %s17 = ssub.s32 1, %s15
  %s18 = scalar_select 0, %s17, %s15
  // Predicated region
  $region2: #{bottleneck_forward.1} parent=0 // pred_check
    _
  $region3: #{bottleneck_forward.1} parent=0 // pred_check_branch
    %20 = sbr.rel (0) target = $region5
  $region4: #{bottleneck_forward.1} parent=0 // pred_region
    _
  $region5: #{bottleneck_forward.1} parent=0 // pred_fallthru
    _
  // Predicated region
  $region6: #{bottleneck_forward.1} parent=0 // pred_check
    _
  $region7: #{bottleneck_forward.1} parent=0 // pred_check_branch
    %22 = sbr.rel (0) target = $region9
  $region8: #{bottleneck_forward.1} parent=0 // pred_region
    _
  $region9: #{bottleneck_forward.1} parent=0 // pred_fallthru
    _
  // Predicated region
  $region10: #{bottleneck_forward.1} parent=0 // pred_check
    _
  $region11: #{bottleneck_forward.1} parent=0 // pred_check_branch
    %24 = sbr.rel (0) target = $region13
  $region12: #{bottleneck_forward.1} parent=0 // pred_region
    _
  $region13: #{bottleneck_forward.1} parent=0 // pred_fallthru
    _
  // Predicated region
  $region14: #{bottleneck_forward.1} parent=0 // pred_check
    _
  $region15: #{bottleneck_forward.1} parent=0 // pred_check_branch
    %26 = sbr.rel (0) target = $region17
  $region16: #{bottleneck_forward.1} parent=0 // pred_region
    _
  $region17: #{bottleneck_forward.1} parent=0 // pred_fallthru
    _
  // Predicated region
  $region18: #{bottleneck_forward.1} parent=0 // pred_check
    _
  $region19: #{bottleneck_forward.1} parent=0 // pred_check_branch
    %28 = sbr.rel (0) target = $region21
  $region20: #{bottleneck_forward.1} parent=0 // pred_region
    _
  $region21: #{bottleneck_forward.1} parent=0 // pred_fallthru
    _
  // Predicated region
  $region22: #{bottleneck_forward.1} parent=0 // pred_check
    _
  $region23: #{bottleneck_forward.1} parent=0 // pred_check_branch
    %30 = sbr.rel (0) target = $region25
  $region24: #{bottleneck_forward.1} parent=0 // pred_region
    _
  $region25: #{bottleneck_forward.1} parent=0 // pred_fallthru
    _
  // Predicated region
  $region26: #{bottleneck_forward.1} parent=0 // pred_check
    _
  $region27: #{bottleneck_forward.1} parent=0 // pred_check_branch
    %32 = sbr.rel (0) target = $region29
  $region28: #{bottleneck_forward.1} parent=0 // pred_region
    _
  $region29: #{bottleneck_forward.1} parent=0 // pred_fallthru
    _
  // Predicated region
  $region30: #{bottleneck_forward.1} parent=0 // pred_check
    _
  $region31: #{bottleneck_forward.1} parent=0 // pred_check_branch
    %34 = sbr.rel (0) target = $region33
  $region32: #{bottleneck_forward.1} parent=0 // pred_region
    _
  $region33: #{bottleneck_forward.1} parent=0 // pred_fallthru
    _
  // Predicated region
  $region34: #{bottleneck_forward.1} parent=0 // pred_check
    _
  $region35: #{bottleneck_forward.1} parent=0 // pred_check_branch
    %36 = sbr.rel (0) target = $region37
  $region36: #{bottleneck_forward.1} parent=0 // pred_region
    _
  $region37: #{bottleneck_forward.1} parent=0 // pred_fallthru
    _
  // Predicated region
  $region38: #{bottleneck_forward.1} parent=0 // pred_check
    _
  $region39: #{bottleneck_forward.1} parent=0 // pred_check_branch
    %38 = sbr.rel (0) target = $region41
  $region40: #{bottleneck_forward.1} parent=0 // pred_region
    _
  $region41: #{bottleneck_forward.1} parent=0 // pred_fallthru
    _
  // Predicated region
  $region42: #{bottleneck_forward.1} parent=0 // pred_check
    _
  $region43: #{bottleneck_forward.1} parent=0 // pred_check_branch
    %40 = sbr.rel (0) target = $region45
  $region44: #{bottleneck_forward.1} parent=0 // pred_region
    _
  $region45: #{bottleneck_forward.1} parent=0 // pred_fallthru
    _
  // Predicated region
  $region46: #{bottleneck_forward.1} parent=0 // pred_check
    _
  $region47: #{bottleneck_forward.1} parent=0 // pred_check_branch
    %42 = sbr.rel (0) target = $region49
  $region48: #{bottleneck_forward.1} parent=0 // pred_region
    _
  $region49: #{bottleneck_forward.1} parent=0 // pred_fallthru
    _
  // Predicated region
  $region50: #{bottleneck_forward.1} parent=0 // pred_check
    _
  $region51: #{bottleneck_forward.1} parent=0 // pred_check_branch
    %44 = sbr.rel (0) target = $region53
  $region52: #{bottleneck_forward.1} parent=0 // pred_region
    _
  $region53: #{bottleneck_forward.1} parent=0 // pred_fallthru
    _
  // Predicated region
  $region54: #{bottleneck_forward.1} parent=0 // pred_check
    _
  $region55: #{bottleneck_forward.1} parent=0 // pred_check_branch
    %46 = sbr.rel (0) target = $region57
  $region56: #{bottleneck_forward.1} parent=0 // pred_region
    _
  $region57: #{bottleneck_forward.1} parent=0 // pred_fallthru
    _
  %v47 = vld [vmem:[%s0] sm:$0xff]
  %v48 = vld [vmem:[%s0 + $0x8] sm:$0xff]
  %v49 = vld [vmem:[%s0 + $0x10] sm:$0xff]
  %v50 = vld [vmem:[%s0 + $0x18] sm:$0xff]
  %v51 = vld [vmem:[%s0 + $0x20] sm:$0xff]
  %v52 = vld [vmem:[%s0 + $0x28] sm:$0xff]
  %v53 = vld [vmem:[%s0 + $0x30] sm:$0xff]
  %v54 = vld [vmem:[%s0 + $0x38] sm:$0xff]
  %v55 = vld [vmem:[%s6] sm:$0xff]
  %v56 = vld [vmem:[%s6 + $0x8] sm:$0xff]
  %v57 = vld [vmem:[%s6 + $0x10] sm:$0xff]
  %v58 = vld [vmem:[%s6 + $0x18] sm:$0xff]
  %v59 = vld [vmem:[%s6 + $0x20] sm:$0xff]
  %v60 = vld [vmem:[%s6 + $0x28] sm:$0xff]
  %v61 = vld [vmem:[%s6 + $0x30] sm:$0xff]
  %v62 = vld [vmem:[%s6 + $0x38] sm:$0xff]
  %v63 = vld [vmem:[%s3] sm:$0xff]
  %v64 = vld [vmem:[%s3 + $0x8] sm:$0xff]
  %v65 = vld [vmem:[%s3 + $0x10] sm:$0xff]
  %v66 = vld [vmem:[%s3 + $0x18] sm:$0xff]
  %v67 = vld [vmem:[%s3 + $0x20] sm:$0xff]
  %v68 = vld [vmem:[%s3 + $0x28] sm:$0xff]
  %v69 = vld [vmem:[%s3 + $0x30] sm:$0xff]
  %v70 = vld [vmem:[%s3 + $0x38] sm:$0xff]
  %v71 = vld [vmem:[%s3 + $0x40] sm:$0xff]
  %v72 = vld [vmem:[%s3 + $0x48] sm:$0xff]
  %v73 = vld [vmem:[%s3 + $0x50] sm:$0xff]
  %v74 = vld [vmem:[%s3 + $0x58] sm:$0xff]
  %v75 = vld [vmem:[%s3 + $0x60] sm:$0xff]
  %v76 = vld [vmem:[%s3 + $0x68] sm:$0xff]
  %v77 = vld [vmem:[%s3 + $0x70] sm:$0xff]
  %v78 = vld [vmem:[%s3 + $0x78] sm:$0xff]
  %v79 = vld [vmem:[%s3 + $0x80] sm:$0xff]
  %v80 = vld [vmem:[%s3 + $0x88] sm:$0xff]
  %v81 = vld [vmem:[%s3 + $0x90] sm:$0xff]
  %v82 = vld [vmem:[%s3 + $0x98] sm:$0xff]
  %v83 = vld [vmem:[%s3 + $0xa0] sm:$0xff]
  %v84 = vld [vmem:[%s3 + $0xa8] sm:$0xff]
  %v85 = vld [vmem:[%s3 + $0xb0] sm:$0xff]
  %v86 = vld [vmem:[%s3 + $0xb8] sm:$0xff]
  %v87 = vld [vmem:[%s3 + $0xc0] sm:$0xff]
  %v88 = vld [vmem:[%s3 + $0xc8] sm:$0xff]
  %v89 = vld [vmem:[%s3 + $0xd0] sm:$0xff]
  %v90 = vld [vmem:[%s3 + $0xd8] sm:$0xff]
  %v91 = vld [vmem:[%s3 + $0xe0] sm:$0xff]
  %v92 = vld [vmem:[%s3 + $0xe8] sm:$0xff]
  %v93 = vld [vmem:[%s3 + $0xf0] sm:$0xff]
  %v94 = vld [vmem:[%s3 + $0xf8] sm:$0xff]
  %95 = vmatpush.msra.mxu0 %v78
  %96 = vmatpush.msra.mxu0 %v77
  %97 = vmatpush.msra.mxu0 %v76
  %98 = vmatpush.msra.mxu0 %v75
  %99 = vmatpush.msra.mxu0 %v74
  %100 = vmatpush.msra.mxu0 %v73
  %101 = vmatpush.msra.mxu0 %v72
  %102 = vmatpush.msra.mxu0 %v71
  %103 = vmatpush.msra.mxu0 %v70
  %104 = vmatpush.msra.mxu0 %v69
  %105 = vmatpush.msra.mxu0 %v68
  %106 = vmatpush.msra.mxu0 %v67
  %107 = vmatpush.msra.mxu0 %v66
  %108 = vmatpush.msra.mxu0 %v65
  %109 = vmatpush.msra.mxu0 %v64
  %110 = vmatpush.msra.mxu0 %v63
  %111 = vmatmul.f32.gmra.mxu0 %v47
  %v112 = vpop.f32.mrf.mxu0
  %v113 = vadd.f32 0.0, %v112
  %114 = vmatmul.f32.gmra.mxu0 %v49
  %v115 = vpop.f32.mrf.mxu0
  %v116 = vadd.f32 0.0, %v115
  %117 = vmatmul.f32.gmra.mxu0 %v51
  %v118 = vpop.f32.mrf.mxu0
  %v119 = vadd.f32 0.0, %v118
  %120 = vmatmul.f32.gmra.mxu0 %v53
  %v121 = vpop.f32.mrf.mxu0
  %v122 = vadd.f32 0.0, %v121
  %123 = vdwg.mxu0
  %124 = vmatpush.msra.mxu0 %v94
  %125 = vmatpush.msra.mxu0 %v93
  %126 = vmatpush.msra.mxu0 %v92
  %127 = vmatpush.msra.mxu0 %v91
  %128 = vmatpush.msra.mxu0 %v90
  %129 = vmatpush.msra.mxu0 %v89
  %130 = vmatpush.msra.mxu0 %v88
  %131 = vmatpush.msra.mxu0 %v87
  %132 = vmatpush.msra.mxu0 %v86
  %133 = vmatpush.msra.mxu0 %v85
  %134 = vmatpush.msra.mxu0 %v84
  %135 = vmatpush.msra.mxu0 %v83
  %136 = vmatpush.msra.mxu0 %v82
  %137 = vmatpush.msra.mxu0 %v81
  %138 = vmatpush.msra.mxu0 %v80
  %139 = vmatpush.msra.mxu0 %v79
  %140 = vmatmul.f32.gmra.mxu0 %v48
  %v141 = vpop.f32.mrf.mxu0
  %v142 = vadd.f32 %v113, %v141
  %143 = vmatmul.f32.gmra.mxu0 %v50
  %v144 = vpop.f32.mrf.mxu0
  %v145 = vadd.f32 %v116, %v144
  %146 = vmatmul.f32.gmra.mxu0 %v52
  %v147 = vpop.f32.mrf.mxu0
  %v148 = vadd.f32 %v119, %v147
  %149 = vmatmul.f32.gmra.mxu0 %v54
  %v150 = vpop.f32.mrf.mxu0
  %v151 = vadd.f32 %v122, %v150
  %152 = vdwg.mxu0
  %v153 = vld [vmem:[%s8] sm:$0x1]
  %v154 = vld [vmem:[%s9] sm:$0x1]
  %vm155 = vcmask 261120
  %v157 = vsel %vm155, 0.03125, 0
  %159 = vmatpush.msra.mxu0 0.0
  %160 = vmatpush.msra.mxu0 0.0
  %161 = vmatpush.msra.mxu0 0.0
  %162 = vmatpush.msra.mxu0 0.0
  %163 = vmatpush.msra.mxu0 0.0
  %164 = vmatpush.msra.mxu0 0.0
  %165 = vmatpush.msra.mxu0 0.0
  %166 = vmatpush.msra.mxu0 0.0
  %167 = vmatpush.msra.mxu0 0.0
  %168 = vmatpush.msra.mxu0 0.0
  %169 = vmatpush.msra.mxu0 0.0
  %170 = vmatpush.msra.mxu0 0.0
  %171 = vmatpush.msra.mxu0 %v151
  %172 = vmatpush.msra.mxu0 %v148
  %173 = vmatpush.msra.mxu0 %v145
  %174 = vmatpush.msra.mxu0 %v142
  %175 = vmatmul.f32.gmra.mxu0 %v157
  %v176 = vpop.f32.mrf.mxu0
  %v177 = vadd.f32 0.0, %v176
  %178 = vdwg.mxu0
  %v179 = vmul.f32 %v142, %v142
  %v180 = vmul.f32 %v145, %v145
  %v181 = vmul.f32 %v148, %v148
  %v182 = vmul.f32 %v151, %v151
  %183 = vmatpush.msra.mxu0 0.0
  %184 = vmatpush.msra.mxu0 0.0
  %185 = vmatpush.msra.mxu0 0.0
  %186 = vmatpush.msra.mxu0 0.0
  %187 = vmatpush.msra.mxu0 0.0
  %188 = vmatpush.msra.mxu0 0.0
  %189 = vmatpush.msra.mxu0 0.0
  %190 = vmatpush.msra.mxu0 0.0
  %191 = vmatpush.msra.mxu0 0.0
  %192 = vmatpush.msra.mxu0 0.0
  %193 = vmatpush.msra.mxu0 0.0
  %194 = vmatpush.msra.mxu0 0.0
  %195 = vmatpush.msra.mxu0 %v182
  %196 = vmatpush.msra.mxu0 %v181
  %197 = vmatpush.msra.mxu0 %v180
  %198 = vmatpush.msra.mxu0 %v179
  %199 = vmatmul.f32.gmra.mxu0 %v157
  %v200 = vpop.f32.mrf.mxu0
  %v201 = vadd.f32 0.0, %v200
  %202 = vdwg.mxu0
  %vm203 = vcmask 523264
  %v205 = vsel %vm203, %v177, 0
  %207 = vmatpush.msra.mxu0 0.0
  %208 = vmatpush.msra.mxu0 0.0
  %209 = vmatpush.msra.mxu0 0.0
  %210 = vmatpush.msra.mxu0 0.0
  %211 = vmatpush.msra.mxu0 0.0
  %212 = vmatpush.msra.mxu0 0.0
  %213 = vmatpush.msra.mxu0 0.0
  %214 = vmatpush.msra.mxu0 0.0
  %215 = vmatpush.msra.mxu0 %v62
  %216 = vmatpush.msra.mxu0 %v61
  %217 = vmatpush.msra.mxu0 %v60
  %218 = vmatpush.msra.mxu0 %v59
  %219 = vmatpush.msra.mxu0 %v58
  %220 = vmatpush.msra.mxu0 %v57
  %221 = vmatpush.msra.mxu0 %v56
  %222 = vmatpush.msra.mxu0 %v55
  %223 = vmatmul.f32.gmra.mxu0 %v205
  %v224 = vpop.f32.mrf.mxu0
  %v225 = vadd.f32 0.0, %v224
  %226 = vdwg.mxu0
  %v228 = vsel %vm203, %v201, 0
  %230 = vmatpush.msra.mxu0 0.0
  %231 = vmatpush.msra.mxu0 0.0
  %232 = vmatpush.msra.mxu0 0.0
  %233 = vmatpush.msra.mxu0 0.0
  %234 = vmatpush.msra.mxu0 0.0
  %235 = vmatpush.msra.mxu0 0.0
  %236 = vmatpush.msra.mxu0 0.0
  %237 = vmatpush.msra.mxu0 0.0
  %238 = vmatpush.msra.mxu0 %v62
  %239 = vmatpush.msra.mxu0 %v61
  %240 = vmatpush.msra.mxu0 %v60
  %241 = vmatpush.msra.mxu0 %v59
  %242 = vmatpush.msra.mxu0 %v58
  %243 = vmatpush.msra.mxu0 %v57
  %244 = vmatpush.msra.mxu0 %v56
  %245 = vmatpush.msra.mxu0 %v55
  %246 = vmatmul.f32.gmra.mxu0 %v228
  %v247 = vpop.f32.mrf.mxu0
  %v248 = vadd.f32 0.0, %v247
  %249 = vdwg.mxu0
  %v250 = vmul.f32 %v225, %v225
  %v251 = vsub.f32 %v248, %v250
  %v252 = vadd.f32 %v251, 1e-05
  %v253 = vrsqrt.pop %v252
  %v254 = vmul.f32 %v253, %v252
  %v255 = vmul.f32 %v254, %v253
  %v256 = vmul.f32 0.5, %v255
  %v257 = vsub.f32 1.5, %v256
  %v258 = vmul.f32 %v253, %v257
  %vm259 = vweird.f32 %v252
  %vm260 = vweird.f32 %v253
  %vm261 = vmor %vm259, %vm260
  %v262 = vsel %vm261, %v253, %v258
  %v263 = vmul.f32 %v153, %v262
  %v264 = vmul.f32 %v225, %v263
  %v265 = vsub.f32 %v154, %v264
  %v267 = vperm.slane %v263, 0
  %v269 = vmul.f32 %v142, %v267
  %v270 = vmul.f32 %v145, %v267
  %v271 = vmul.f32 %v148, %v267
  %v272 = vmul.f32 %v151, %v267
  %v274 = vperm.slane %v265, 0
  %v276 = vadd.f32 %v269, %v274
  %v277 = vadd.f32 %v270, %v274
  %v278 = vadd.f32 %v271, %v274
  %v279 = vadd.f32 %v272, %v274
  %vm280 = vcmp.gt.f32.partialorder %v276, 0.0
  %vm281 = vcmp.gt.f32.partialorder %v277, 0.0
  %vm282 = vcmp.gt.f32.partialorder %v278, 0.0
  %vm283 = vcmp.gt.f32.partialorder %v279, 0.0
  %v284 = vmul.f32 %v276, 0.1
  %v285 = vmul.f32 %v277, 0.1
  %v286 = vmul.f32 %v278, 0.1
  %v287 = vmul.f32 %v279, 0.1
  %v288 = vsel %vm280, %v276, %v284
  %v289 = vsel %vm281, %v277, %v285
  %v290 = vsel %vm282, %v278, %v286
  %v291 = vsel %vm283, %v279, %v287
  %v292 = vrot.slane %v288, 7
  %v293 = vrot.slane %v289, 7
  %v294 = vrot.slane %v290, 7
  %v295 = vrot.slane %v291, 7
  %v296 = vlaneseq
  %v297 = vshrl.u32 %v296, 7
  %vm298 = vcmp.lt.s32.totalorder %v297, 1
  %v299 = vsel %vm298, %v294, %v295
  %v300 = vsel %vm298, %v293, %v294
  %v301 = vsel %vm298, %v292, %v293
  %v302 = vsel %vm298, %v295, %v292
  %v303 = vld [vmem:[%s1] sm:$0xff]
  %v304 = vld [vmem:[%s1 + $0x8] sm:$0xff]
  %v305 = vld [vmem:[%s1 + $0x10] sm:$0xff]
  %v306 = vld [vmem:[%s1 + $0x18] sm:$0xff]
  %308 = vset.pattern.permute.xlu0 0
  %309 = vperm.xlu0 %308, %v303
  %v310 = vpop.permute.xlu0 %309
  %313 = vset.pattern.permute.xlu0 0
  %314 = vperm.xlu0 %313, %v304
  %v315 = vpop.permute.xlu0 %314
  %318 = vset.pattern.permute.xlu0 0
  %319 = vperm.xlu0 %318, %v305
  %v320 = vpop.permute.xlu0 %319
  %323 = vset.pattern.permute.xlu0 0
  %324 = vperm.xlu0 %323, %v306
  %v325 = vpop.permute.xlu0 %324
  %v327 = vmul.f32 %v302, %v310
  %v328 = vmul.f32 %v301, %v315
  %v329 = vmul.f32 %v300, %v320
  %v330 = vmul.f32 %v299, %v325
  %v331 = vrot.slane %v288, 1
  %v332 = vrot.slane %v289, 1
  %v333 = vrot.slane %v290, 1
  %v334 = vrot.slane %v291, 1
  %vm335 = vcmp.lt.s32.totalorder %v297, 7
  %v336 = vsel %vm335, %v333, %v334
  %v337 = vsel %vm335, %v332, %v333
  %v338 = vsel %vm335, %v331, %v332
  %v339 = vsel %vm335, %v334, %v331
  %v340 = vld [vmem:[%s2] sm:$0xff]
  %v341 = vld [vmem:[%s2 + $0x8] sm:$0xff]
  %v342 = vld [vmem:[%s2 + $0x10] sm:$0xff]
  %v343 = vld [vmem:[%s2 + $0x18] sm:$0xff]
  %345 = vset.pattern.permute.xlu0 0
  %346 = vperm.xlu0 %345, %v340
  %v347 = vpop.permute.xlu0 %346
  %350 = vset.pattern.permute.xlu0 0
  %351 = vperm.xlu0 %350, %v341
  %v352 = vpop.permute.xlu0 %351
  %355 = vset.pattern.permute.xlu0 0
  %356 = vperm.xlu0 %355, %v342
  %v357 = vpop.permute.xlu0 %356
  %360 = vset.pattern.permute.xlu0 0
  %361 = vperm.xlu0 %360, %v343
  %v362 = vpop.permute.xlu0 %361
  %v364 = vmul.f32 %v338, %v347
  %v365 = vmul.f32 %v337, %v352
  %v366 = vmul.f32 %v336, %v357
  %v367 = vmul.f32 %v339, %v362
  %v368 = vld [vmem:[%s4] sm:$0xff]
  %v369 = vld [vmem:[%s4 + $0x8] sm:$0xff]
  %v370 = vld [vmem:[%s4 + $0x10] sm:$0xff]
  %v371 = vld [vmem:[%s4 + $0x18] sm:$0xff]
  %v372 = vld [vmem:[%s4 + $0x20] sm:$0xff]
  %v373 = vld [vmem:[%s4 + $0x28] sm:$0xff]
  %v374 = vld [vmem:[%s4 + $0x30] sm:$0xff]
  %v375 = vld [vmem:[%s4 + $0x38] sm:$0xff]
  %s376 = scalar_lea.vmem %s4, 64
  %v377 = vld [vmem:[%s376] sm:$0xff]
  %v378 = vld [vmem:[%s376 + $0x8] sm:$0xff]
  %v379 = vld [vmem:[%s376 + $0x10] sm:$0xff]
  %v380 = vld [vmem:[%s376 + $0x18] sm:$0xff]
  %v381 = vld [vmem:[%s376 + $0x20] sm:$0xff]
  %v382 = vld [vmem:[%s376 + $0x28] sm:$0xff]
  %v383 = vld [vmem:[%s376 + $0x30] sm:$0xff]
  %v384 = vld [vmem:[%s376 + $0x38] sm:$0xff]
  %v386 = vsel %vm203, %v288, 0
  %v389 = vsel %vm203, %v289, 0
  %v392 = vsel %vm203, %v290, 0
  %v395 = vsel %vm203, %v291, 0
  %397 = vmatpush.msra.mxu0 0.0
  %398 = vmatpush.msra.mxu0 0.0
  %399 = vmatpush.msra.mxu0 0.0
  %400 = vmatpush.msra.mxu0 0.0
  %401 = vmatpush.msra.mxu0 0.0
  %402 = vmatpush.msra.mxu0 0.0
  %403 = vmatpush.msra.mxu0 0.0
  %404 = vmatpush.msra.mxu0 0.0
  %405 = vmatpush.msra.mxu0 %v384
  %406 = vmatpush.msra.mxu0 %v383
  %407 = vmatpush.msra.mxu0 %v382
  %408 = vmatpush.msra.mxu0 %v381
  %409 = vmatpush.msra.mxu0 %v380
  %410 = vmatpush.msra.mxu0 %v379
  %411 = vmatpush.msra.mxu0 %v378
  %412 = vmatpush.msra.mxu0 %v377
  %413 = vmatmul.f32.gmra.mxu0 %v386
  %v414 = vpop.f32.mrf.mxu0
  %v415 = vadd.f32 0.0, %v414
  %416 = vmatmul.f32.gmra.mxu0 %v389
  %v417 = vpop.f32.mrf.mxu0
  %v418 = vadd.f32 0.0, %v417
  %419 = vmatmul.f32.gmra.mxu0 %v392
  %v420 = vpop.f32.mrf.mxu0
  %v421 = vadd.f32 0.0, %v420
  %422 = vmatmul.f32.gmra.mxu0 %v395
  %v423 = vpop.f32.mrf.mxu0
  %v424 = vadd.f32 0.0, %v423
  %425 = vdwg.mxu0
  %v427 = vsel %vm203, %v327, 0
  %v430 = vsel %vm203, %v328, 0
  %v433 = vsel %vm203, %v329, 0
  %v436 = vsel %vm203, %v330, 0
  %438 = vmatpush.msra.mxu0 0.0
  %439 = vmatpush.msra.mxu0 0.0
  %440 = vmatpush.msra.mxu0 0.0
  %441 = vmatpush.msra.mxu0 0.0
  %442 = vmatpush.msra.mxu0 0.0
  %443 = vmatpush.msra.mxu0 0.0
  %444 = vmatpush.msra.mxu0 0.0
  %445 = vmatpush.msra.mxu0 0.0
  %446 = vmatpush.msra.mxu0 %v375
  %447 = vmatpush.msra.mxu0 %v374
  %448 = vmatpush.msra.mxu0 %v373
  %449 = vmatpush.msra.mxu0 %v372
  %450 = vmatpush.msra.mxu0 %v371
  %451 = vmatpush.msra.mxu0 %v370
  %452 = vmatpush.msra.mxu0 %v369
  %453 = vmatpush.msra.mxu0 %v368
  %454 = vmatmul.f32.gmra.mxu0 %v427
  %v455 = vpop.f32.mrf.mxu0
  %v456 = vadd.f32 %v415, %v455
  %457 = vmatmul.f32.gmra.mxu0 %v430
  %v458 = vpop.f32.mrf.mxu0
  %v459 = vadd.f32 %v418, %v458
  %460 = vmatmul.f32.gmra.mxu0 %v433
  %v461 = vpop.f32.mrf.mxu0
  %v462 = vadd.f32 %v421, %v461
  %463 = vmatmul.f32.gmra.mxu0 %v436
  %v464 = vpop.f32.mrf.mxu0
  %v465 = vadd.f32 %v424, %v464
  %466 = vdwg.mxu0
  %s467 = scalar_lea.vmem %s4, 128
  %v468 = vld [vmem:[%s467] sm:$0xff]
  %v469 = vld [vmem:[%s467 + $0x8] sm:$0xff]
  %v470 = vld [vmem:[%s467 + $0x10] sm:$0xff]
  %v471 = vld [vmem:[%s467 + $0x18] sm:$0xff]
  %v472 = vld [vmem:[%s467 + $0x20] sm:$0xff]
  %v473 = vld [vmem:[%s467 + $0x28] sm:$0xff]
  %v474 = vld [vmem:[%s467 + $0x30] sm:$0xff]
  %v475 = vld [vmem:[%s467 + $0x38] sm:$0xff]
  %v477 = vsel %vm203, %v364, 0
  %v480 = vsel %vm203, %v365, 0
  %v483 = vsel %vm203, %v366, 0
  %v486 = vsel %vm203, %v367, 0
  %488 = vmatpush.msra.mxu0 0.0
  %489 = vmatpush.msra.mxu0 0.0
  %490 = vmatpush.msra.mxu0 0.0
  %491 = vmatpush.msra.mxu0 0.0
  %492 = vmatpush.msra.mxu0 0.0
  %493 = vmatpush.msra.mxu0 0.0
  %494 = vmatpush.msra.mxu0 0.0
  %495 = vmatpush.msra.mxu0 0.0
  %496 = vmatpush.msra.mxu0 %v475
  %497 = vmatpush.msra.mxu0 %v474
  %498 = vmatpush.msra.mxu0 %v473
  %499 = vmatpush.msra.mxu0 %v472
  %500 = vmatpush.msra.mxu0 %v471
  %501 = vmatpush.msra.mxu0 %v470
  %502 = vmatpush.msra.mxu0 %v469
  %503 = vmatpush.msra.mxu0 %v468
  %504 = vmatmul.f32.gmra.mxu0 %v477
  %v505 = vpop.f32.mrf.mxu0
  %v506 = vadd.f32 0.0, %v505
  %507 = vmatmul.f32.gmra.mxu0 %v480
  %v508 = vpop.f32.mrf.mxu0
  %v509 = vadd.f32 0.0, %v508
  %510 = vmatmul.f32.gmra.mxu0 %v483
  %v511 = vpop.f32.mrf.mxu0
  %v512 = vadd.f32 0.0, %v511
  %513 = vmatmul.f32.gmra.mxu0 %v486
  %v514 = vpop.f32.mrf.mxu0
  %v515 = vadd.f32 0.0, %v514
  %516 = vdwg.mxu0
  %v517 = vadd.f32 %v456, %v506
  %v518 = vadd.f32 %v459, %v509
  %v519 = vadd.f32 %v462, %v512
  %v520 = vadd.f32 %v465, %v515
  %v521 = vld [vmem:[%s10] sm:$0x1]
  %v522 = vld [vmem:[%s11] sm:$0x1]
  %523 = vmatpush.msra.mxu0 0.0
  %524 = vmatpush.msra.mxu0 0.0
  %525 = vmatpush.msra.mxu0 0.0
  %526 = vmatpush.msra.mxu0 0.0
  %527 = vmatpush.msra.mxu0 0.0
  %528 = vmatpush.msra.mxu0 0.0
  %529 = vmatpush.msra.mxu0 0.0
  %530 = vmatpush.msra.mxu0 0.0
  %531 = vmatpush.msra.mxu0 0.0
  %532 = vmatpush.msra.mxu0 0.0
  %533 = vmatpush.msra.mxu0 0.0
  %534 = vmatpush.msra.mxu0 0.0
  %535 = vmatpush.msra.mxu0 %v520
  %536 = vmatpush.msra.mxu0 %v519
  %537 = vmatpush.msra.mxu0 %v518
  %538 = vmatpush.msra.mxu0 %v517
  %539 = vmatmul.f32.gmra.mxu0 %v157
  %v540 = vpop.f32.mrf.mxu0
  %v541 = vadd.f32 0.0, %v540
  %542 = vdwg.mxu0
  %v543 = vmul.f32 %v517, %v517
  %v544 = vmul.f32 %v518, %v518
  %v545 = vmul.f32 %v519, %v519
  %v546 = vmul.f32 %v520, %v520
  %547 = vmatpush.msra.mxu0 0.0
  %548 = vmatpush.msra.mxu0 0.0
  %549 = vmatpush.msra.mxu0 0.0
  %550 = vmatpush.msra.mxu0 0.0
  %551 = vmatpush.msra.mxu0 0.0
  %552 = vmatpush.msra.mxu0 0.0
  %553 = vmatpush.msra.mxu0 0.0
  %554 = vmatpush.msra.mxu0 0.0
  %555 = vmatpush.msra.mxu0 0.0
  %556 = vmatpush.msra.mxu0 0.0
  %557 = vmatpush.msra.mxu0 0.0
  %558 = vmatpush.msra.mxu0 0.0
  %559 = vmatpush.msra.mxu0 %v546
  %560 = vmatpush.msra.mxu0 %v545
  %561 = vmatpush.msra.mxu0 %v544
  %562 = vmatpush.msra.mxu0 %v543
  %563 = vmatmul.f32.gmra.mxu0 %v157
  %v564 = vpop.f32.mrf.mxu0
  %v565 = vadd.f32 0.0, %v564
  %566 = vdwg.mxu0
  %v568 = vsel %vm203, %v541, 0
  %570 = vmatpush.msra.mxu0 0.0
  %571 = vmatpush.msra.mxu0 0.0
  %572 = vmatpush.msra.mxu0 0.0
  %573 = vmatpush.msra.mxu0 0.0
  %574 = vmatpush.msra.mxu0 0.0
  %575 = vmatpush.msra.mxu0 0.0
  %576 = vmatpush.msra.mxu0 0.0
  %577 = vmatpush.msra.mxu0 0.0
  %578 = vmatpush.msra.mxu0 %v62
  %579 = vmatpush.msra.mxu0 %v61
  %580 = vmatpush.msra.mxu0 %v60
  %581 = vmatpush.msra.mxu0 %v59
  %582 = vmatpush.msra.mxu0 %v58
  %583 = vmatpush.msra.mxu0 %v57
  %584 = vmatpush.msra.mxu0 %v56
  %585 = vmatpush.msra.mxu0 %v55
  %586 = vmatmul.f32.gmra.mxu0 %v568
  %v587 = vpop.f32.mrf.mxu0
  %v588 = vadd.f32 0.0, %v587
  %589 = vdwg.mxu0
  %v591 = vsel %vm203, %v565, 0
  %593 = vmatpush.msra.mxu0 0.0
  %594 = vmatpush.msra.mxu0 0.0
  %595 = vmatpush.msra.mxu0 0.0
  %596 = vmatpush.msra.mxu0 0.0
  %597 = vmatpush.msra.mxu0 0.0
  %598 = vmatpush.msra.mxu0 0.0
  %599 = vmatpush.msra.mxu0 0.0
  %600 = vmatpush.msra.mxu0 0.0
  %601 = vmatpush.msra.mxu0 %v62
  %602 = vmatpush.msra.mxu0 %v61
  %603 = vmatpush.msra.mxu0 %v60
  %604 = vmatpush.msra.mxu0 %v59
  %605 = vmatpush.msra.mxu0 %v58
  %606 = vmatpush.msra.mxu0 %v57
  %607 = vmatpush.msra.mxu0 %v56
  %608 = vmatpush.msra.mxu0 %v55
  %609 = vmatmul.f32.gmra.mxu0 %v591
  %v610 = vpop.f32.mrf.mxu0
  %v611 = vadd.f32 0.0, %v610
  %612 = vdwg.mxu0
  %v613 = vmul.f32 %v588, %v588
  %v614 = vsub.f32 %v611, %v613
  %v615 = vadd.f32 %v614, 1e-05
  %v616 = vrsqrt.pop %v615
  %v617 = vmul.f32 %v616, %v615
  %v618 = vmul.f32 %v617, %v616
  %v619 = vmul.f32 0.5, %v618
  %v620 = vsub.f32 1.5, %v619
  %v621 = vmul.f32 %v616, %v620
  %vm622 = vweird.f32 %v615
  %vm623 = vweird.f32 %v616
  %vm624 = vmor %vm622, %vm623
  %v625 = vsel %vm624, %v616, %v621
  %v626 = vmul.f32 %v521, %v625
  %v627 = vmul.f32 %v588, %v626
  %v628 = vsub.f32 %v522, %v627
  %v630 = vperm.slane %v626, 0
  %v632 = vmul.f32 %v517, %v630
  %v633 = vmul.f32 %v518, %v630
  %v634 = vmul.f32 %v519, %v630
  %v635 = vmul.f32 %v520, %v630
  %v637 = vperm.slane %v628, 0
  %v639 = vadd.f32 %v632, %v637
  %v640 = vadd.f32 %v633, %v637
  %v641 = vadd.f32 %v634, %v637
  %v642 = vadd.f32 %v635, %v637
  %vm643 = vcmp.gt.f32.partialorder %v639, 0.0
  %vm644 = vcmp.gt.f32.partialorder %v640, 0.0
  %vm645 = vcmp.gt.f32.partialorder %v641, 0.0
  %vm646 = vcmp.gt.f32.partialorder %v642, 0.0
  %v647 = vmul.f32 %v639, 0.1
  %v648 = vmul.f32 %v640, 0.1
  %v649 = vmul.f32 %v641, 0.1
  %v650 = vmul.f32 %v642, 0.1
  %v651 = vsel %vm643, %v639, %v647
  %v652 = vsel %vm644, %v640, %v648
  %v653 = vsel %vm645, %v641, %v649
  %v654 = vsel %vm646, %v642, %v650
  %v655 = vld [vmem:[%s5] sm:$0xff]
  %v656 = vld [vmem:[%s5 + $0x8] sm:$0xff]
  %v657 = vld [vmem:[%s5 + $0x10] sm:$0xff]
  %v658 = vld [vmem:[%s5 + $0x18] sm:$0xff]
  %v659 = vld [vmem:[%s5 + $0x20] sm:$0xff]
  %v660 = vld [vmem:[%s5 + $0x28] sm:$0xff]
  %v661 = vld [vmem:[%s5 + $0x30] sm:$0xff]
  %v662 = vld [vmem:[%s5 + $0x38] sm:$0xff]
  %v663 = vld [vmem:[%s5 + $0x40] sm:$0xff]
  %v664 = vld [vmem:[%s5 + $0x48] sm:$0xff]
  %v665 = vld [vmem:[%s5 + $0x50] sm:$0xff]
  %v666 = vld [vmem:[%s5 + $0x58] sm:$0xff]
  %v667 = vld [vmem:[%s5 + $0x60] sm:$0xff]
  %v668 = vld [vmem:[%s5 + $0x68] sm:$0xff]
  %v669 = vld [vmem:[%s5 + $0x70] sm:$0xff]
  %v670 = vld [vmem:[%s5 + $0x78] sm:$0xff]
  %v672 = vsel %vm203, %v651, 0
  %v675 = vsel %vm203, %v652, 0
  %v678 = vsel %vm203, %v653, 0
  %v681 = vsel %vm203, %v654, 0
  %683 = vmatpush.msra.mxu0 0.0
  %684 = vmatpush.msra.mxu0 0.0
  %685 = vmatpush.msra.mxu0 0.0
  %686 = vmatpush.msra.mxu0 0.0
  %687 = vmatpush.msra.mxu0 0.0
  %688 = vmatpush.msra.mxu0 0.0
  %689 = vmatpush.msra.mxu0 0.0
  %690 = vmatpush.msra.mxu0 0.0
  %691 = vmatpush.msra.mxu0 %v669
  %692 = vmatpush.msra.mxu0 %v667
  %693 = vmatpush.msra.mxu0 %v665
  %694 = vmatpush.msra.mxu0 %v663
  %695 = vmatpush.msra.mxu0 %v661
  %696 = vmatpush.msra.mxu0 %v659
  %697 = vmatpush.msra.mxu0 %v657
  %698 = vmatpush.msra.mxu0 %v655
  %699 = vmatmul.f32.gmra.mxu0 %v672
  %v700 = vpop.f32.mrf.mxu0
  %v701 = vadd.f32 0.0, %v700
  %702 = vmatmul.f32.gmra.mxu0 %v675
  %v703 = vpop.f32.mrf.mxu0
  %v704 = vadd.f32 0.0, %v703
  %705 = vmatmul.f32.gmra.mxu0 %v678
  %v706 = vpop.f32.mrf.mxu0
  %v707 = vadd.f32 0.0, %v706
  %708 = vmatmul.f32.gmra.mxu0 %v681
  %v709 = vpop.f32.mrf.mxu0
  %v710 = vadd.f32 0.0, %v709
  %711 = vdwg.mxu0
  %712 = vmatpush.msra.mxu0 0.0
  %713 = vmatpush.msra.mxu0 0.0
  %714 = vmatpush.msra.mxu0 0.0
  %715 = vmatpush.msra.mxu0 0.0
  %716 = vmatpush.msra.mxu0 0.0
  %717 = vmatpush.msra.mxu0 0.0
  %718 = vmatpush.msra.mxu0 0.0
  %719 = vmatpush.msra.mxu0 0.0
  %720 = vmatpush.msra.mxu0 %v670
  %721 = vmatpush.msra.mxu0 %v668
  %722 = vmatpush.msra.mxu0 %v666
  %723 = vmatpush.msra.mxu0 %v664
  %724 = vmatpush.msra.mxu0 %v662
  %725 = vmatpush.msra.mxu0 %v660
  %726 = vmatpush.msra.mxu0 %v658
  %727 = vmatpush.msra.mxu0 %v656
  %728 = vmatmul.f32.gmra.mxu0 %v672
  %v729 = vpop.f32.mrf.mxu0
  %v730 = vadd.f32 0.0, %v729
  %731 = vmatmul.f32.gmra.mxu0 %v675
  %v732 = vpop.f32.mrf.mxu0
  %v733 = vadd.f32 0.0, %v732
  %734 = vmatmul.f32.gmra.mxu0 %v678
  %v735 = vpop.f32.mrf.mxu0
  %v736 = vadd.f32 0.0, %v735
  %737 = vmatmul.f32.gmra.mxu0 %v681
  %v738 = vpop.f32.mrf.mxu0
  %v739 = vadd.f32 0.0, %v738
  %740 = vdwg.mxu0
  %v741 = vld [vmem:[%s7] sm:$0xff]
  %v742 = vld [vmem:[%s7 + $0x8] sm:$0xff]
  %v743 = vld [vmem:[%s7 + $0x10] sm:$0xff]
  %v744 = vld [vmem:[%s7 + $0x18] sm:$0xff]
  %v745 = vld [vmem:[%s7 + $0x20] sm:$0xff]
  %v746 = vld [vmem:[%s7 + $0x28] sm:$0xff]
  %v747 = vld [vmem:[%s7 + $0x30] sm:$0xff]
  %v748 = vld [vmem:[%s7 + $0x38] sm:$0xff]
  %v749 = vld [vmem:[%s7 + $0x40] sm:$0xff]
  %v750 = vld [vmem:[%s7 + $0x48] sm:$0xff]
  %v751 = vld [vmem:[%s7 + $0x50] sm:$0xff]
  %v752 = vld [vmem:[%s7 + $0x58] sm:$0xff]
  %v753 = vld [vmem:[%s7 + $0x60] sm:$0xff]
  %v754 = vld [vmem:[%s7 + $0x68] sm:$0xff]
  %v755 = vld [vmem:[%s7 + $0x70] sm:$0xff]
  %v756 = vld [vmem:[%s7 + $0x78] sm:$0xff]
  %v757 = vld [vmem:[%s7 + $0x80] sm:$0xff]
  %v758 = vld [vmem:[%s7 + $0x88] sm:$0xff]
  %v759 = vld [vmem:[%s7 + $0x90] sm:$0xff]
  %v760 = vld [vmem:[%s7 + $0x98] sm:$0xff]
  %v761 = vld [vmem:[%s7 + $0xa0] sm:$0xff]
  %v762 = vld [vmem:[%s7 + $0xa8] sm:$0xff]
  %v763 = vld [vmem:[%s7 + $0xb0] sm:$0xff]
  %v764 = vld [vmem:[%s7 + $0xb8] sm:$0xff]
  %v765 = vld [vmem:[%s7 + $0xc0] sm:$0xff]
  %v766 = vld [vmem:[%s7 + $0xc8] sm:$0xff]
  %v767 = vld [vmem:[%s7 + $0xd0] sm:$0xff]
  %v768 = vld [vmem:[%s7 + $0xd8] sm:$0xff]
  %v769 = vld [vmem:[%s7 + $0xe0] sm:$0xff]
  %v770 = vld [vmem:[%s7 + $0xe8] sm:$0xff]
  %v771 = vld [vmem:[%s7 + $0xf0] sm:$0xff]
  %v772 = vld [vmem:[%s7 + $0xf8] sm:$0xff]
  %v773 = vld [vmem:[%s7 + $0x100] sm:$0xff]
  %v774 = vld [vmem:[%s7 + $0x108] sm:$0xff]
  %v775 = vld [vmem:[%s7 + $0x110] sm:$0xff]
  %v776 = vld [vmem:[%s7 + $0x118] sm:$0xff]
  %v777 = vld [vmem:[%s7 + $0x120] sm:$0xff]
  %v778 = vld [vmem:[%s7 + $0x128] sm:$0xff]
  %v779 = vld [vmem:[%s7 + $0x130] sm:$0xff]
  %v780 = vld [vmem:[%s7 + $0x138] sm:$0xff]
  %v781 = vld [vmem:[%s7 + $0x140] sm:$0xff]
  %v782 = vld [vmem:[%s7 + $0x148] sm:$0xff]
  %v783 = vld [vmem:[%s7 + $0x150] sm:$0xff]
  %v784 = vld [vmem:[%s7 + $0x158] sm:$0xff]
  %v785 = vld [vmem:[%s7 + $0x160] sm:$0xff]
  %v786 = vld [vmem:[%s7 + $0x168] sm:$0xff]
  %v787 = vld [vmem:[%s7 + $0x170] sm:$0xff]
  %v788 = vld [vmem:[%s7 + $0x178] sm:$0xff]
  %v789 = vld [vmem:[%s7 + $0x180] sm:$0xff]
  %v790 = vld [vmem:[%s7 + $0x188] sm:$0xff]
  %v791 = vld [vmem:[%s7 + $0x190] sm:$0xff]
  %v792 = vld [vmem:[%s7 + $0x198] sm:$0xff]
  %v793 = vld [vmem:[%s7 + $0x1a0] sm:$0xff]
  %v794 = vld [vmem:[%s7 + $0x1a8] sm:$0xff]
  %v795 = vld [vmem:[%s7 + $0x1b0] sm:$0xff]
  %v796 = vld [vmem:[%s7 + $0x1b8] sm:$0xff]
  %v797 = vld [vmem:[%s7 + $0x1c0] sm:$0xff]
  %v798 = vld [vmem:[%s7 + $0x1c8] sm:$0xff]
  %v799 = vld [vmem:[%s7 + $0x1d0] sm:$0xff]
  %v800 = vld [vmem:[%s7 + $0x1d8] sm:$0xff]
  %v801 = vld [vmem:[%s7 + $0x1e0] sm:$0xff]
  %v802 = vld [vmem:[%s7 + $0x1e8] sm:$0xff]
  %v803 = vld [vmem:[%s7 + $0x1f0] sm:$0xff]
  %v804 = vld [vmem:[%s7 + $0x1f8] sm:$0xff]
  %v805 = vld [vmem:[%s12] sm:$0x3]
  %v806 = vld [vmem:[%s13] sm:$0x3]
  %807 = vmatpush.msra.mxu0 0.0
  %808 = vmatpush.msra.mxu0 0.0
  %809 = vmatpush.msra.mxu0 0.0
  %810 = vmatpush.msra.mxu0 0.0
  %811 = vmatpush.msra.mxu0 0.0
  %812 = vmatpush.msra.mxu0 0.0
  %813 = vmatpush.msra.mxu0 0.0
  %814 = vmatpush.msra.mxu0 0.0
  %815 = vmatpush.msra.mxu0 0.0
  %816 = vmatpush.msra.mxu0 0.0
  %817 = vmatpush.msra.mxu0 0.0
  %818 = vmatpush.msra.mxu0 0.0
  %819 = vmatpush.msra.mxu0 %v710
  %820 = vmatpush.msra.mxu0 %v707
  %821 = vmatpush.msra.mxu0 %v704
  %822 = vmatpush.msra.mxu0 %v701
  %823 = vmatmul.f32.gmra.mxu0 %v157
  %v824 = vpop.f32.mrf.mxu0
  %v825 = vadd.f32 0.0, %v824
  %826 = vdwg.mxu0
  %827 = vmatpush.msra.mxu0 0.0
  %828 = vmatpush.msra.mxu0 0.0
  %829 = vmatpush.msra.mxu0 0.0
  %830 = vmatpush.msra.mxu0 0.0
  %831 = vmatpush.msra.mxu0 0.0
  %832 = vmatpush.msra.mxu0 0.0
  %833 = vmatpush.msra.mxu0 0.0
  %834 = vmatpush.msra.mxu0 0.0
  %835 = vmatpush.msra.mxu0 0.0
  %836 = vmatpush.msra.mxu0 0.0
  %837 = vmatpush.msra.mxu0 0.0
  %838 = vmatpush.msra.mxu0 0.0
  %839 = vmatpush.msra.mxu0 %v739
  %840 = vmatpush.msra.mxu0 %v736
  %841 = vmatpush.msra.mxu0 %v733
  %842 = vmatpush.msra.mxu0 %v730
  %843 = vmatmul.f32.gmra.mxu0 %v157
  %v844 = vpop.f32.mrf.mxu0
  %v845 = vadd.f32 0.0, %v844
  %846 = vdwg.mxu0
  %v847 = vmul.f32 %v701, %v701
  %v848 = vmul.f32 %v730, %v730
  %v849 = vmul.f32 %v704, %v704
  %v850 = vmul.f32 %v733, %v733
  %v851 = vmul.f32 %v707, %v707
  %v852 = vmul.f32 %v736, %v736
  %v853 = vmul.f32 %v710, %v710
  %v854 = vmul.f32 %v739, %v739
  %855 = vmatpush.msra.mxu0 0.0
  %856 = vmatpush.msra.mxu0 0.0
  %857 = vmatpush.msra.mxu0 0.0
  %858 = vmatpush.msra.mxu0 0.0
  %859 = vmatpush.msra.mxu0 0.0
  %860 = vmatpush.msra.mxu0 0.0
  %861 = vmatpush.msra.mxu0 0.0
  %862 = vmatpush.msra.mxu0 0.0
  %863 = vmatpush.msra.mxu0 0.0
  %864 = vmatpush.msra.mxu0 0.0
  %865 = vmatpush.msra.mxu0 0.0
  %866 = vmatpush.msra.mxu0 0.0
  %867 = vmatpush.msra.mxu0 %v853
  %868 = vmatpush.msra.mxu0 %v851
  %869 = vmatpush.msra.mxu0 %v849
  %870 = vmatpush.msra.mxu0 %v847
  %871 = vmatmul.f32.gmra.mxu0 %v157
  %v872 = vpop.f32.mrf.mxu0
  %v873 = vadd.f32 0.0, %v872
  %874 = vdwg.mxu0
  %875 = vmatpush.msra.mxu0 0.0
  %876 = vmatpush.msra.mxu0 0.0
  %877 = vmatpush.msra.mxu0 0.0
  %878 = vmatpush.msra.mxu0 0.0
  %879 = vmatpush.msra.mxu0 0.0
  %880 = vmatpush.msra.mxu0 0.0
  %881 = vmatpush.msra.mxu0 0.0
  %882 = vmatpush.msra.mxu0 0.0
  %883 = vmatpush.msra.mxu0 0.0
  %884 = vmatpush.msra.mxu0 0.0
  %885 = vmatpush.msra.mxu0 0.0
  %886 = vmatpush.msra.mxu0 0.0
  %887 = vmatpush.msra.mxu0 %v854
  %888 = vmatpush.msra.mxu0 %v852
  %889 = vmatpush.msra.mxu0 %v850
  %890 = vmatpush.msra.mxu0 %v848
  %891 = vmatmul.f32.gmra.mxu0 %v157
  %v892 = vpop.f32.mrf.mxu0
  %v893 = vadd.f32 0.0, %v892
  %894 = vdwg.mxu0
  %895 = vmatpush.msra.mxu0 %v771
  %896 = vmatpush.msra.mxu0 %v769
  %897 = vmatpush.msra.mxu0 %v767
  %898 = vmatpush.msra.mxu0 %v765
  %899 = vmatpush.msra.mxu0 %v763
  %900 = vmatpush.msra.mxu0 %v761
  %901 = vmatpush.msra.mxu0 %v759
  %902 = vmatpush.msra.mxu0 %v757
  %903 = vmatpush.msra.mxu0 %v755
  %904 = vmatpush.msra.mxu0 %v753
  %905 = vmatpush.msra.mxu0 %v751
  %906 = vmatpush.msra.mxu0 %v749
  %907 = vmatpush.msra.mxu0 %v747
  %908 = vmatpush.msra.mxu0 %v745
  %909 = vmatpush.msra.mxu0 %v743
  %910 = vmatpush.msra.mxu0 %v741
  %911 = vmatmul.f32.gmra.mxu0 %v825
  %v912 = vpop.f32.mrf.mxu0
  %v913 = vadd.f32 0.0, %v912
  %914 = vdwg.mxu0
  %915 = vmatpush.msra.mxu0 %v803
  %916 = vmatpush.msra.mxu0 %v801
  %917 = vmatpush.msra.mxu0 %v799
  %918 = vmatpush.msra.mxu0 %v797
  %919 = vmatpush.msra.mxu0 %v795
  %920 = vmatpush.msra.mxu0 %v793
  %921 = vmatpush.msra.mxu0 %v791
  %922 = vmatpush.msra.mxu0 %v789
  %923 = vmatpush.msra.mxu0 %v787
  %924 = vmatpush.msra.mxu0 %v785
  %925 = vmatpush.msra.mxu0 %v783
  %926 = vmatpush.msra.mxu0 %v781
  %927 = vmatpush.msra.mxu0 %v779
  %928 = vmatpush.msra.mxu0 %v777
  %929 = vmatpush.msra.mxu0 %v775
  %930 = vmatpush.msra.mxu0 %v773
  %931 = vmatmul.f32.gmra.mxu0 %v845
  %v932 = vpop.f32.mrf.mxu0
  %v933 = vadd.f32 %v913, %v932
  %934 = vdwg.mxu0
  %935 = vmatpush.msra.mxu0 %v772
  %936 = vmatpush.msra.mxu0 %v770
  %937 = vmatpush.msra.mxu0 %v768
  %938 = vmatpush.msra.mxu0 %v766
  %939 = vmatpush.msra.mxu0 %v764
  %940 = vmatpush.msra.mxu0 %v762
  %941 = vmatpush.msra.mxu0 %v760
  %942 = vmatpush.msra.mxu0 %v758
  %943 = vmatpush.msra.mxu0 %v756
  %944 = vmatpush.msra.mxu0 %v754
  %945 = vmatpush.msra.mxu0 %v752
  %946 = vmatpush.msra.mxu0 %v750
  %947 = vmatpush.msra.mxu0 %v748
  %948 = vmatpush.msra.mxu0 %v746
  %949 = vmatpush.msra.mxu0 %v744
  %950 = vmatpush.msra.mxu0 %v742
  %951 = vmatmul.f32.gmra.mxu0 %v825
  %v952 = vpop.f32.mrf.mxu0
  %v953 = vadd.f32 0.0, %v952
  %954 = vdwg.mxu0
  %955 = vmatpush.msra.mxu0 %v804
  %956 = vmatpush.msra.mxu0 %v802
  %957 = vmatpush.msra.mxu0 %v800
  %958 = vmatpush.msra.mxu0 %v798
  %959 = vmatpush.msra.mxu0 %v796
  %960 = vmatpush.msra.mxu0 %v794
  %961 = vmatpush.msra.mxu0 %v792
  %962 = vmatpush.msra.mxu0 %v790
  %963 = vmatpush.msra.mxu0 %v788
  %964 = vmatpush.msra.mxu0 %v786
  %965 = vmatpush.msra.mxu0 %v784
  %966 = vmatpush.msra.mxu0 %v782
  %967 = vmatpush.msra.mxu0 %v780
  %968 = vmatpush.msra.mxu0 %v778
  %969 = vmatpush.msra.mxu0 %v776
  %970 = vmatpush.msra.mxu0 %v774
  %971 = vmatmul.f32.gmra.mxu0 %v845
  %v972 = vpop.f32.mrf.mxu0
  %v973 = vadd.f32 %v953, %v972
  %974 = vdwg.mxu0
  %975 = vmatpush.msra.mxu0 %v771
  %976 = vmatpush.msra.mxu0 %v769
  %977 = vmatpush.msra.mxu0 %v767
  %978 = vmatpush.msra.mxu0 %v765
  %979 = vmatpush.msra.mxu0 %v763
  %980 = vmatpush.msra.mxu0 %v761
  %981 = vmatpush.msra.mxu0 %v759
  %982 = vmatpush.msra.mxu0 %v757
  %983 = vmatpush.msra.mxu0 %v755
  %984 = vmatpush.msra.mxu0 %v753
  %985 = vmatpush.msra.mxu0 %v751
  %986 = vmatpush.msra.mxu0 %v749
  %987 = vmatpush.msra.mxu0 %v747
  %988 = vmatpush.msra.mxu0 %v745
  %989 = vmatpush.msra.mxu0 %v743
  %990 = vmatpush.msra.mxu0 %v741
  %991 = vmatmul.f32.gmra.mxu0 %v873
  %v992 = vpop.f32.mrf.mxu0
  %v993 = vadd.f32 0.0, %v992
  %994 = vdwg.mxu0
  %995 = vmatpush.msra.mxu0 %v803
  %996 = vmatpush.msra.mxu0 %v801
  %997 = vmatpush.msra.mxu0 %v799
  %998 = vmatpush.msra.mxu0 %v797
  %999 = vmatpush.msra.mxu0 %v795
  %1000 = vmatpush.msra.mxu0 %v793
  %1001 = vmatpush.msra.mxu0 %v791
  %1002 = vmatpush.msra.mxu0 %v789
  %1003 = vmatpush.msra.mxu0 %v787
  %1004 = vmatpush.msra.mxu0 %v785
  %1005 = vmatpush.msra.mxu0 %v783
  %1006 = vmatpush.msra.mxu0 %v781
  %1007 = vmatpush.msra.mxu0 %v779
  %1008 = vmatpush.msra.mxu0 %v777
  %1009 = vmatpush.msra.mxu0 %v775
  %1010 = vmatpush.msra.mxu0 %v773
  %1011 = vmatmul.f32.gmra.mxu0 %v893
  %v1012 = vpop.f32.mrf.mxu0
  %v1013 = vadd.f32 %v993, %v1012
  %1014 = vdwg.mxu0
  %1015 = vmatpush.msra.mxu0 %v772
  %1016 = vmatpush.msra.mxu0 %v770
  %1017 = vmatpush.msra.mxu0 %v768
  %1018 = vmatpush.msra.mxu0 %v766
  %1019 = vmatpush.msra.mxu0 %v764
  %1020 = vmatpush.msra.mxu0 %v762
  %1021 = vmatpush.msra.mxu0 %v760
  %1022 = vmatpush.msra.mxu0 %v758
  %1023 = vmatpush.msra.mxu0 %v756
  %1024 = vmatpush.msra.mxu0 %v754
  %1025 = vmatpush.msra.mxu0 %v752
  %1026 = vmatpush.msra.mxu0 %v750
  %1027 = vmatpush.msra.mxu0 %v748
  %1028 = vmatpush.msra.mxu0 %v746
  %1029 = vmatpush.msra.mxu0 %v744
  %1030 = vmatpush.msra.mxu0 %v742
  %1031 = vmatmul.f32.gmra.mxu0 %v873
  %v1032 = vpop.f32.mrf.mxu0
  %v1033 = vadd.f32 0.0, %v1032
  %1034 = vdwg.mxu0
  %1035 = vmatpush.msra.mxu0 %v804
  %1036 = vmatpush.msra.mxu0 %v802
  %1037 = vmatpush.msra.mxu0 %v800
  %1038 = vmatpush.msra.mxu0 %v798
  %1039 = vmatpush.msra.mxu0 %v796
  %1040 = vmatpush.msra.mxu0 %v794
  %1041 = vmatpush.msra.mxu0 %v792
  %1042 = vmatpush.msra.mxu0 %v790
  %1043 = vmatpush.msra.mxu0 %v788
  %1044 = vmatpush.msra.mxu0 %v786
  %1045 = vmatpush.msra.mxu0 %v784
  %1046 = vmatpush.msra.mxu0 %v782
  %1047 = vmatpush.msra.mxu0 %v780
  %1048 = vmatpush.msra.mxu0 %v778
  %1049 = vmatpush.msra.mxu0 %v776
  %1050 = vmatpush.msra.mxu0 %v774
  %1051 = vmatmul.f32.gmra.mxu0 %v893
  %v1052 = vpop.f32.mrf.mxu0
  %v1053 = vadd.f32 %v1033, %v1052
  %1054 = vdwg.mxu0
  %v1055 = vmul.f32 %v933, %v933
  %v1056 = vmul.f32 %v973, %v973
  %v1057 = vsub.f32 %v1013, %v1055
  %v1058 = vsub.f32 %v1053, %v1056
  %v1059 = vadd.f32 %v1057, 1e-05
  %v1060 = vadd.f32 %v1058, 1e-05
  %v1061 = vrsqrt.pop %v1059
  %v1062 = vmul.f32 %v1061, %v1059
  %v1063 = vmul.f32 %v1062, %v1061
  %v1064 = vmul.f32 0.5, %v1063
  %v1065 = vsub.f32 1.5, %v1064
  %v1066 = vmul.f32 %v1061, %v1065
  %vm1067 = vweird.f32 %v1059
  %vm1068 = vweird.f32 %v1061
  %vm1069 = vmor %vm1067, %vm1068
  %v1070 = vsel %vm1069, %v1061, %v1066
  %v1071 = vrsqrt.pop %v1060
  %v1072 = vmul.f32 %v1071, %v1060
  %v1073 = vmul.f32 %v1072, %v1071
  %v1074 = vmul.f32 0.5, %v1073
  %v1075 = vsub.f32 1.5, %v1074
  %v1076 = vmul.f32 %v1071, %v1075
  %vm1077 = vweird.f32 %v1060
  %vm1078 = vweird.f32 %v1071
  %vm1079 = vmor %vm1077, %vm1078
  %v1080 = vsel %vm1079, %v1071, %v1076
  %v1083 = vrot.slane %v1080, 7
  %vm1084 = vcmask 1040384
  %v1085 = vsel %vm1084, %v1070, %v1083
  %v1087 = vmul.f32 %v805, %v1085
  %v1089 = vperm.slane %v1087, 0
  %v1090 = vperm.slane %v1087, 1
  %v1093 = vmul.f32 %v933, %v1089
  %v1094 = vmul.f32 %v973, %v1090
  %v1097 = vrot.slane %v1094, 7
  %v1098 = vsel %vm1084, %v1093, %v1097
  %v1100 = vsub.f32 %v806, %v1098
  %v1101 = vmul.f32 %v701, %v1089
  %v1102 = vmul.f32 %v730, %v1090
  %v1103 = vmul.f32 %v704, %v1089
  %v1104 = vmul.f32 %v733, %v1090
  %v1105 = vmul.f32 %v707, %v1089
  %v1106 = vmul.f32 %v736, %v1090
  %v1107 = vmul.f32 %v710, %v1089
  %v1108 = vmul.f32 %v739, %v1090
  %v1110 = vperm.slane %v1100, 0
  %v1111 = vperm.slane %v1100, 1
  %v1114 = vadd.f32 %v1101, %v1110
  %v1115 = vadd.f32 %v1102, %v1111
  %v1116 = vadd.f32 %v1103, %v1110
  %v1117 = vadd.f32 %v1104, %v1111
  %v1118 = vadd.f32 %v1105, %v1110
  %v1119 = vadd.f32 %v1106, %v1111
  %v1120 = vadd.f32 %v1107, %v1110
  %v1121 = vadd.f32 %v1108, %v1111
  %v1122 = vadd.f32 %v1114, %v47
  %v1123 = vadd.f32 %v1115, %v48
  %v1124 = vadd.f32 %v1116, %v49
  %v1125 = vadd.f32 %v1117, %v50
  %v1126 = vadd.f32 %v1118, %v51
  %v1127 = vadd.f32 %v1119, %v52
  %v1128 = vadd.f32 %v1120, %v53
  %v1129 = vadd.f32 %v1121, %v54
  %vm1130 = vcmp.gt.f32.partialorder %v1122, 0.0
  %vm1131 = vcmp.gt.f32.partialorder %v1123, 0.0
  %vm1132 = vcmp.gt.f32.partialorder %v1124, 0.0
  %vm1133 = vcmp.gt.f32.partialorder %v1125, 0.0
  %vm1134 = vcmp.gt.f32.partialorder %v1126, 0.0
  %vm1135 = vcmp.gt.f32.partialorder %v1127, 0.0
  %vm1136 = vcmp.gt.f32.partialorder %v1128, 0.0
  %vm1137 = vcmp.gt.f32.partialorder %v1129, 0.0
  %v1138 = vmul.f32 %v1122, 0.1
  %v1139 = vmul.f32 %v1123, 0.1
  %v1140 = vmul.f32 %v1124, 0.1
  %v1141 = vmul.f32 %v1125, 0.1
  %v1142 = vmul.f32 %v1126, 0.1
  %v1143 = vmul.f32 %v1127, 0.1
  %v1144 = vmul.f32 %v1128, 0.1
  %v1145 = vmul.f32 %v1129, 0.1
  %v1146 = vsel %vm1130, %v1122, %v1138
  %v1147 = vsel %vm1131, %v1123, %v1139
  %v1148 = vsel %vm1132, %v1124, %v1140
  %v1149 = vsel %vm1133, %v1125, %v1141
  %v1150 = vsel %vm1134, %v1126, %v1142
  %v1151 = vsel %vm1135, %v1127, %v1143
  %v1152 = vsel %vm1136, %v1128, %v1144
  %v1153 = vsel %vm1137, %v1129, %v1145
  %1154 = vst [vmem:[%s14] sm:$0xff] %v1146
  %1155 = vst [vmem:[%s14 + $0x8] sm:$0xff] %v1147
  %1156 = vst [vmem:[%s14 + $0x10] sm:$0xff] %v1148
  %1157 = vst [vmem:[%s14 + $0x18] sm:$0xff] %v1149
  %1158 = vst [vmem:[%s14 + $0x20] sm:$0xff] %v1150
  %1159 = vst [vmem:[%s14 + $0x28] sm:$0xff] %v1151
  %1160 = vst [vmem:[%s14 + $0x30] sm:$0xff] %v1152
  %1161 = vst [vmem:[%s14 + $0x38] sm:$0xff] %v1153
  // Predicated region
  $region58: #{bottleneck_forward.1} parent=0 // pred_check
    _
  $region59: #{bottleneck_forward.1} parent=0 // pred_check_branch
    %1163 = sbr.rel (0) target = $region61
  $region60: #{bottleneck_forward.1} parent=0 // pred_region
    _
  $region61: #{bottleneck_forward.1} parent=0 // pred_fallthru
    _
  // Predicated region
  $region62: #{bottleneck_forward.1} parent=0 // pred_check
    _
  $region63: #{bottleneck_forward.1} parent=0 // pred_check_branch
    %1165 = sbr.rel (0) target = $region65
  $region64: #{bottleneck_forward.1} parent=0 // pred_region
    _
  $region65: #{bottleneck_forward.1} parent=0 // pred_fallthru
    _

</llo_original>
